<compile_context>
chip_gen: v7x
topology: tpu7x:2x2x1
jax: 0.10.0
libtpu: 0.0.40
codegen_flags: <defaults>
</compile_context>

<pallas_src>
import functools

import jax
import jax.numpy as jnp
from jax.experimental import pallas as pl
from jax.experimental.pallas import tpu as pltpu


# Per-input-buffer VMEM budget (Pallas double-buffers inputs).  Conservative
# enough for v5e's 16 MiB default scoped VMEM and v7x's 64 MiB physical VMEM,
# while still giving big, pipeline-friendly blocks.
_INPUT_BUFFER_BUDGET = 4 * 1024 * 1024
# <= default scoped limit on v6e/v7x, raises v5e's 16 MiB default.
_VMEM_LIMIT_BYTES = 32 * 1024 * 1024


def _round_up(a, m):
    return ((a + m - 1) // m) * m


def _min_value(dtype):
    dtype = jnp.dtype(dtype)
    if jnp.issubdtype(dtype, jnp.floating):
        return -jnp.inf
    if jnp.issubdtype(dtype, jnp.integer):
        return jnp.iinfo(dtype).min
    if dtype == jnp.bool_:
        return False
    raise ValueError(f"unsupported dtype {dtype}")


def _choose_lane_fold(H, W):
    """Fold G consecutive H-rows into the lane axis so the last dim >= 128.

    Only applied when it leaves a substantial reduction (H//G >= 8) inside the
    kernel, since the fold costs one extra HBM round trip over an intermediate
    that is H//G times smaller than the input.
    """
    if W >= 128:
        return 1
    for g in range(1, H + 1):
        if H % g == 0 and g * W >= 128:
            if H // g >= 8:
                return g
            break
    return 1


def _choose_tiles(BC, Hr, WL, itemsize, budget):
    """Pick (TBC, THr) so one input block fits the per-buffer VMEM budget."""
    lane_bytes = _round_up(WL, 128) * itemsize  # one lane-padded VMEM row
    # Largest TBC (multiple of 8) that still affords >= 8 sublanes of Hr.
    tbc_cap = max(8, (budget // (8 * lane_bytes)) // 8 * 8)
    TBC = min(_round_up(BC, 8), 512, tbc_cap)
    max_thr = budget // (TBC * lane_bytes)
    if max_thr >= Hr:
        THr = Hr  # whole reduction axis in a single block
    else:
        THr = max(8, (max_thr // 8) * 8)  # multiple of 8 (tiling constraint)
    return TBC, THr


def _max_axis1_kernel(x_ref, o_ref):
    """Max-reduce the middle (sublane) axis of a (TBC, THr, WL) block.

    The output block's index_map ignores the h grid axis, so it stays resident
    in VMEM across the reduction and doubles as the running-max accumulator.
    The reduction stays on the sublane axis (VPU/XLU only, no MXU, no
    transpose) and is fully hidden under the HBM-read roofline.
    """
    part = jnp.max(x_ref[...], axis=1)  # (TBC, WL)
    h = pl.program_id(1)

    @pl.when(h == 0)
    def _():
        o_ref[...] = part

    @pl.when(h > 0)
    def _():
        o_ref[...] = jnp.maximum(o_ref[...], part)


@functools.partial(jax.jit, static_argnames=("input_buffer_budget",))
def _my_max_impl(x, *, input_buffer_budget=_INPUT_BUFFER_BUDGET):
    assert x.ndim >= 3, "torch.max(x, 2) needs at least 3 dims"
    shape = x.shape
    B, C, H = shape[0], shape[1], shape[2]
    trailing = shape[3:]
    W = 1
    for d in trailing:
        W *= d
    out_shape_final = shape[:2] + trailing

    BC = B * C
    dtype = x.dtype
    itemsize = jnp.dtype(dtype).itemsize
    pad_val = _min_value(dtype)

    # --- lane-density fold: view (BC, H, W) as (BC, H//G, G*W), G*W >= 128 ---
    G = _choose_lane_fold(H, W)
    Hr, WL = H // G, G * W
    xv = x.reshape(BC, Hr, WL)  # contiguous -> free

    # --- tile sizes & padding so every block is full (no partial tiles) ------
    TBC, THr = _choose_tiles(BC, Hr, WL, itemsize, input_buffer_budget)
    BC_pad = _round_up(BC, TBC)
    Hr_pad = Hr if THr == Hr else _round_up(Hr, THr)
    if BC_pad != BC or Hr_pad != Hr:
        # Reduction-axis padding must be the dtype minimum so it never wins.
        xv = jnp.pad(
            xv,
            ((0, BC_pad - BC), (0, Hr_pad - Hr), (0, 0)),
            constant_values=pad_val,
        )

    grid = (BC_pad // TBC, Hr_pad // THr)

    out = pl.pallas_call(
        _max_axis1_kernel,
        out_shape=jax.ShapeDtypeStruct((BC_pad, WL), dtype),
        grid_spec=pltpu.PrefetchScalarGridSpec(
            num_scalar_prefetch=0,
            grid=grid,
            in_specs=[
                # (TBC, THr, WL): THr is a multiple of 8 or the full (padded)
                # axis; WL is always the full last axis.
                pl.BlockSpec((TBC, THr, WL), lambda i, h: (i, h, 0)),
                # TODO(synk): sweep pipeline_mode=pl.Buffered(3) on this spec
                # if profiling still shows exposed DMA (kernel is HBM-read
                # bound).
            ],
            # Output block index ignores h -> resident accumulator across the
            # reduction axis.
            out_specs=pl.BlockSpec((TBC, WL), lambda i, h: (i, 0)),
        ),
        compiler_params=pltpu.CompilerParams(
            # BC tiles are independent -> "parallel" (lets v7x shard the grid
            # across its two TensorCores); reduction axis is "arbitrary", last.
            dimension_semantics=("parallel", "arbitrary"),
            vmem_limit_bytes=_VMEM_LIMIT_BYTES,
        ),
    )(xv)

    out = out[:BC]  # drop BC padding
    if G > 1:
        # Finish the lane fold: max over the G H-rows packed into the lane
        # axis.  This intermediate is H//G times smaller than the input, so
        # the XLA epilogue is cheap relative to the HBM-bound kernel pass.
        out = jnp.max(out.reshape(BC, G, W), axis=1)
    return out.reshape(out_shape_final)


def my_max(x):
    """Pallas equivalent of `torch.max(x, 2)[0]` (values only)."""
    return _my_max_impl(x, input_buffer_budget=_INPUT_BUFFER_BUDGET)


if __name__ == "__main__":
    key = jax.random.PRNGKey(0)

    # Primary check — shapes implied by the module's forward (B, C, H, W).
    x = jax.random.normal(key, (2, 4, 16, 16), dtype=jnp.float32)
    out = my_max(x)
    jax.block_until_ready(out)
    ref = jnp.max(x, axis=2)
    assert out.shape == (2, 4, 16)
    assert jnp.allclose(out, ref), "mismatch vs reference (primary)"

    # Sanity: lane-density fold path (H large enough that G*W >= 128 pays).
    x2 = jax.random.normal(jax.random.PRNGKey(1), (2, 4, 128, 16),
                           dtype=jnp.float32)
    out2 = jax.block_until_ready(my_max(x2))
    assert jnp.allclose(out2, jnp.max(x2, axis=2)), "mismatch (fold path)"

    # Sanity: multi-step reduction axis + dtype-min padding (a tiny VMEM
    # budget forces H-chunking; non-divisible B*C and H//G force padding).
    x3 = jax.random.normal(jax.random.PRNGKey(2), (2, 5, 80, 16),
                           dtype=jnp.float32)
    out3 = jax.block_until_ready(
        _my_max_impl(x3, input_buffer_budget=4096))
    assert jnp.allclose(out3, jnp.max(x3, axis=2)), "mismatch (chunked path)"

    print("KERNEL_OK")
</pallas_src>

<mosaic_0001>
module attributes {stable_mosaic.version = 11 : i64} {
  func.func @_max_axis1_kernel(%arg0: i32, %arg1: i32, %arg2: memref<8x16x16xf32, #tpu.memory_space<vmem>>, %arg3: memref<8x16xf32, #tpu.memory_space<vmem>>) attributes {dimension_semantics = [#tpu.dimension_semantics<parallel>, #tpu.dimension_semantics<arbitrary>], iteration_bounds = array<i64: 1, 1>, scalar_prefetch = 0 : i64, scratch_operands = 0 : i64, tpu.core_type = #tpu.core_type<tc>, window_params = [{transform_indices = @transform_0, window_bounds = array<i64: 8, 16, 16>}, {transform_indices = @transform_1, window_bounds = array<i64: 8, 16>}]} {
    %c0 = arith.constant 0 : index
    %c0_0 = arith.constant 0 : index
    %c0_1 = arith.constant 0 : index
    %0 = vector.load %arg2[%c0, %c0_0, %c0_1] : memref<8x16x16xf32, #tpu.memory_space<vmem>>, vector<8x16x16xf32>
    %cst = arith.constant dense<0xFF800000> : vector<8x16xf32>
    %1 = vector.multi_reduction <maximumf>, %0, %cst [1] : vector<8x16x16xf32> to vector<8x16xf32>
    %c0_i32 = arith.constant 0 : i32
    %2 = arith.cmpi eq, %arg1, %c0_i32 : i32
    %3 = arith.extui %2 : i1 to i32
    %c0_i32_2 = arith.constant 0 : i32
    %4 = arith.cmpi ne, %3, %c0_i32_2 : i32
    scf.if %4 {
      %c0_5 = arith.constant 0 : index
      %c0_6 = arith.constant 0 : index
      %8 = vector.load %arg3[%c0_5, %c0_6] : memref<8x16xf32, #tpu.memory_space<vmem>>, vector<8x16xf32>
      tpu.vector_store %arg3[%c0_5, %c0_6], %1 {strides = array<i32>} : memref<8x16xf32, #tpu.memory_space<vmem>>, vector<8x16xf32>,
    } else {
    }
    %c0_i32_3 = arith.constant 0 : i32
    %5 = arith.cmpi sgt, %arg1, %c0_i32_3 : i32
    %6 = arith.extui %5 : i1 to i32
    %c0_i32_4 = arith.constant 0 : i32
    %7 = arith.cmpi ne, %6, %c0_i32_4 : i32
    scf.if %7 {
      %c0_5 = arith.constant 0 : index
      %c0_6 = arith.constant 0 : index
      %8 = vector.load %arg3[%c0_5, %c0_6] : memref<8x16xf32, #tpu.memory_space<vmem>>, vector<8x16xf32>
      %9 = arith.maximumf %8, %1 : vector<8x16xf32>
      %c0_7 = arith.constant 0 : index
      %c0_8 = arith.constant 0 : index
      %10 = vector.load %arg3[%c0_7, %c0_8] : memref<8x16xf32, #tpu.memory_space<vmem>>, vector<8x16xf32>
      tpu.vector_store %arg3[%c0_7, %c0_8], %9 {strides = array<i32>} : memref<8x16xf32, #tpu.memory_space<vmem>>, vector<8x16xf32>,
    } else {
    }
    return
  }
  func.func @transform_0(%arg0: i32, %arg1: i32) -> (i32, i32, i32) {
    %c0_i32 = arith.constant 0 : i32
    %c0_i32_0 = arith.constant 0 : i32
    return %arg0, %arg1, %c0_i32 : i32, i32, i32
  }
  func.func @transform_1(%arg0: i32, %arg1: i32) -> (i32, i32) {
    %c0_i32 = arith.constant 0 : i32
    %c0_i32_0 = arith.constant 0 : i32
    return %arg0, %c0_i32 : i32, i32
  }
}

</mosaic_0001>

<llo_original>
// kernel: _my_max_impl.1
$region0: #{_my_max_impl.1}
  #allocation0 [shape = 'u32[]', space=smem, size = 0x4, offset = 0x4, fixed_abs, tag = 'smem constant byte address 0x4 - core index']
  #allocation1 [shape = 'u32[144,128]{1,0:T(1,128)}', space=vmem, size = 0x12000, scoped, tag = 'internal scratch']
  %s0 = inlined_call_operand.hbm [shape: f32[8,16,16], index: 0, kind: input, shape index: {}]
  %s1 = inlined_call_operand.hbm [shape: f32[8,16], index: 1, kind: output, shape index: {}]
  %s2 = sld [smem:[#allocation0]]
  $region26: #{_my_max_impl.1} parent=0
    _
  %s4 = ssub.s32 1, %s2
  %s5 = scalar_select 0, %s4, %s2
  $region1: #{_my_max_impl.1} parent=0
    #allocation2 [shape = 'u8[65536]{0}', space=vmem, size = 0x10000, scoped, tag = 'input window, operand 0, single buffered']
    #allocation3 [shape = 's32[1]{0}', space=sflag, size = 0x4, scoped, tag = 'scoped memory for _my_max_impl.1']
    #allocation4 [shape = 's32[1]{0}', space=sflag, size = 0x4, scoped, tag = 'scoped memory for _my_max_impl.1']
    #allocation5 [shape = 'u8[4096]{0}', space=vmem, size = 0x1000, scoped, tag = 'output window, operand 0, single buffered']
    %6 = vsyncpa [#allocation3], 0
    %7 = vsyncpa [#allocation4], 0
    // Predicated region
    $region2: #{_my_max_impl.1} parent=1 // pred_check
      _
    $region3: #{_my_max_impl.1} parent=1 // pred_check_branch
      %9 = sbr.rel (0) target = $region5
    $region4: #{_my_max_impl.1} parent=1 // pred_region
      %s11 = ssub.s32 2048, 2048
      %12 = vsyncadd [#allocation3], %s11
      %s13 = sshll.u32 [#allocation2], 4
      %s14 = int_to_ptr.vmem [resolvable:$true] %s13
      %19 = dma.hbm_to_vmem [thread:$0]  %s0, 2048, %s14, [#allocation3], 128, 128, 8
    $region5: #{_my_max_impl.1} parent=1 // pred_fallthru
      _
    // Predicated region
    $region6: #{_my_max_impl.1} parent=1 // pred_check
      _
    $region7: #{_my_max_impl.1} parent=1 // pred_check_branch
      %21 = sbr.rel (0) target = $region9
    $region8: #{_my_max_impl.1} parent=1 // pred_region
      %22 = dma.done [#allocation3], 2048
    $region9: #{_my_max_impl.1} parent=1 // pred_fallthru
      _
    %v23 = vld [vmem:[#allocation2] sm:$0xff]
    %v24 = vld [vmem:[#allocation2 + $0x8] sm:$0xff]
    %v25 = vld [vmem:[#allocation2 + $0x10] sm:$0xff]
    %v26 = vld [vmem:[#allocation2 + $0x18] sm:$0xff]
    %v27 = vld [vmem:[#allocation2 + $0x20] sm:$0xff]
    %v28 = vld [vmem:[#allocation2 + $0x28] sm:$0xff]
    %v29 = vld [vmem:[#allocation2 + $0x30] sm:$0xff]
    %v30 = vld [vmem:[#allocation2 + $0x38] sm:$0xff]
    %v31 = vld [vmem:[#allocation2 + $0x40] sm:$0xff]
    %v32 = vld [vmem:[#allocation2 + $0x48] sm:$0xff]
    %v33 = vld [vmem:[#allocation2 + $0x50] sm:$0xff]
    %v34 = vld [vmem:[#allocation2 + $0x58] sm:$0xff]
    %v35 = vld [vmem:[#allocation2 + $0x60] sm:$0xff]
    %v36 = vld [vmem:[#allocation2 + $0x68] sm:$0xff]
    %v37 = vld [vmem:[#allocation2 + $0x70] sm:$0xff]
    %v38 = vld [vmem:[#allocation2 + $0x78] sm:$0xff]
    %vm39 = vcmask 130048
    %v40 = vsel %vm39, %v23, -inf
    %v41 = vsel %vm39, %v24, -inf
    %v42 = vmax.f32 %v40, %v41
    %v43 = vrot.slane %v42, 4
    %v44 = vmax.f32 %v42, %v43
    %v45 = vrot.slane %v44, 2
    %v46 = vmax.f32 %v44, %v45
    %v47 = vrot.slane %v46, 1
    %v48 = vmax.f32 %v46, %v47
    %v49 = vsel %vm39, %v25, -inf
    %v50 = vsel %vm39, %v26, -inf
    %v51 = vmax.f32 %v49, %v50
    %v52 = vrot.slane %v51, 4
    %v53 = vmax.f32 %v51, %v52
    %v54 = vrot.slane %v53, 2
    %v55 = vmax.f32 %v53, %v54
    %v56 = vrot.slane %v55, 1
    %v57 = vmax.f32 %v55, %v56
    %v58 = vsel %vm39, %v27, -inf
    %v59 = vsel %vm39, %v28, -inf
    %v60 = vmax.f32 %v58, %v59
    %v61 = vrot.slane %v60, 4
    %v62 = vmax.f32 %v60, %v61
    %v63 = vrot.slane %v62, 2
    %v64 = vmax.f32 %v62, %v63
    %v65 = vrot.slane %v64, 1
    %v66 = vmax.f32 %v64, %v65
    %v67 = vsel %vm39, %v29, -inf
    %v68 = vsel %vm39, %v30, -inf
    %v69 = vmax.f32 %v67, %v68
    %v70 = vrot.slane %v69, 4
    %v71 = vmax.f32 %v69, %v70
    %v72 = vrot.slane %v71, 2
    %v73 = vmax.f32 %v71, %v72
    %v74 = vrot.slane %v73, 1
    %v75 = vmax.f32 %v73, %v74
    %v76 = vsel %vm39, %v31, -inf
    %v77 = vsel %vm39, %v32, -inf
    %v78 = vmax.f32 %v76, %v77
    %v79 = vrot.slane %v78, 4
    %v80 = vmax.f32 %v78, %v79
    %v81 = vrot.slane %v80, 2
    %v82 = vmax.f32 %v80, %v81
    %v83 = vrot.slane %v82, 1
    %v84 = vmax.f32 %v82, %v83
    %v85 = vsel %vm39, %v33, -inf
    %v86 = vsel %vm39, %v34, -inf
    %v87 = vmax.f32 %v85, %v86
    %v88 = vrot.slane %v87, 4
    %v89 = vmax.f32 %v87, %v88
    %v90 = vrot.slane %v89, 2
    %v91 = vmax.f32 %v89, %v90
    %v92 = vrot.slane %v91, 1
    %v93 = vmax.f32 %v91, %v92
    %v94 = vsel %vm39, %v35, -inf
    %v95 = vsel %vm39, %v36, -inf
    %v96 = vmax.f32 %v94, %v95
    %v97 = vrot.slane %v96, 4
    %v98 = vmax.f32 %v96, %v97
    %v99 = vrot.slane %v98, 2
    %v100 = vmax.f32 %v98, %v99
    %v101 = vrot.slane %v100, 1
    %v102 = vmax.f32 %v100, %v101
    %v103 = vsel %vm39, %v37, -inf
    %v104 = vsel %vm39, %v38, -inf
    %v105 = vmax.f32 %v103, %v104
    %v106 = vrot.slane %v105, 4
    %v107 = vmax.f32 %v105, %v106
    %v108 = vrot.slane %v107, 2
    %v109 = vmax.f32 %v107, %v108
    %v110 = vrot.slane %v109, 1
    %v111 = vmax.f32 %v109, %v110
    %p112 = scmp.eq.s32.totalorder 0, 0
    // Predicated region
    $region10: #{_my_max_impl.1} parent=1 // pred_check
      %p113 = pneg %p112
    $region11: #{_my_max_impl.1} parent=1 // pred_check_branch
      %115 = sbr.rel (%p113) target = $region13
    $region12: #{_my_max_impl.1} parent=1 // pred_region
      %vm124 = vcmask 1041409
      %v125 = vsel %vm124, %v57, %v48
      %vm126 = vcmask 1042434
      %v127 = vsel %vm126, %v66, %v125
      %vm128 = vcmask 1043459
      %v129 = vsel %vm128, %v75, %v127
      %vm130 = vcmask 1044484
      %v131 = vsel %vm130, %v84, %v129
      %vm132 = vcmask 1045509
      %v133 = vsel %vm132, %v93, %v131
      %vm134 = vcmask 1046534
      %v135 = vsel %vm134, %v102, %v133
      %vm136 = vcmask 1047559
      %v137 = vsel %vm136, %v111, %v135
      %139 = vst.msk [vmem:[#allocation5] sm:$0xff] %vm39, %v137
    $region13: #{_my_max_impl.1} parent=1 // pred_fallthru
      _
    %p140 = scmp.gt.s32.totalorder 0, 0
    // Predicated region
    $region14: #{_my_max_impl.1} parent=1 // pred_check
      %p141 = pneg %p140
    $region15: #{_my_max_impl.1} parent=1 // pred_check_branch
      %143 = sbr.rel (%p141) target = $region17
    $region16: #{_my_max_impl.1} parent=1 // pred_region
      %v144 = vld [vmem:[#allocation5] sm:$0xff]
      %vm153 = vcmask 1041409
      %v154 = vsel %vm153, %v57, %v48
      %vm155 = vcmask 1042434
      %v156 = vsel %vm155, %v66, %v154
      %vm157 = vcmask 1043459
      %v158 = vsel %vm157, %v75, %v156
      %vm159 = vcmask 1044484
      %v160 = vsel %vm159, %v84, %v158
      %vm161 = vcmask 1045509
      %v162 = vsel %vm161, %v93, %v160
      %vm163 = vcmask 1046534
      %v164 = vsel %vm163, %v102, %v162
      %vm165 = vcmask 1047559
      %v166 = vsel %vm165, %v111, %v164
      %v168 = vmax.f32 %v144, %v166
      %169 = vst.msk [vmem:[#allocation5] sm:$0xff] %vm39, %v168
    $region17: #{_my_max_impl.1} parent=1 // pred_fallthru
      _
    // Predicated region
    $region18: #{_my_max_impl.1} parent=1 // pred_check
      _
    $region19: #{_my_max_impl.1} parent=1 // pred_check_branch
      %171 = sbr.rel (0) target = $region21
    $region20: #{_my_max_impl.1} parent=1 // pred_region
      %s173 = ssub.s32 128, 128
      %174 = vsyncadd [#allocation4], %s173
      %s176 = sshll.u32 [#allocation5], 4
      %s177 = int_to_ptr.vmem [resolvable:$true] %s176
      %179 = dma.vmem_to_hbm [thread:$0]  %s177, 128, %s1, [#allocation4]
    $region21: #{_my_max_impl.1} parent=1 // pred_fallthru
      _
    // Predicated region
    $region22: #{_my_max_impl.1} parent=1 // pred_check
      _
    $region23: #{_my_max_impl.1} parent=1 // pred_check_branch
      %181 = sbr.rel (0) target = $region25
    $region24: #{_my_max_impl.1} parent=1 // pred_region
      %182 = dma.done [#allocation4], 128
    $region25: #{_my_max_impl.1} parent=1 // pred_fallthru
      _
    %183 = vsyncpa [#allocation3], 1
    %184 = vsyncpa [#allocation4], 1

</llo_original>
